<compile_context>
chip_gen: v7x
topology: tpu7x:2x2x1
jax: 0.10.0
libtpu: 0.0.40
codegen_flags: <defaults>
</compile_context>

<pallas_src>
import jax
import jax.numpy as jnp
import numpy as np
from jax.experimental import pallas as pl
from jax.experimental.pallas import tpu as pltpu


def cdm_kernel(v_ref, i_ref, w_ref, p_ref, b_ref, fv_ref, fi_ref):
    # v_ref / i_ref : (R, HW) f32   rows = (sample, channel), lane-dense spatial
    # w_ref         : (R, R)  bf16  block-diagonal fused 1x1 conv weight
    # p_ref         : (HW, W+H) bf16  [mean-over-H | mean-over-W] pooling
    # b_ref         : (W+H, HW) bf16  [broadcast-over-H ; broadcast-over-W]
    # fv_ref/fi_ref : (R, HW) f32   outputs (alias the inputs in HBM)
    v = v_ref[...]
    ir = i_ref[...]
    dv = v - ir                      # diff_visible
    di = ir - v                      # diff_infrared (== -dv)

    f32 = jnp.float32
    bf16 = jnp.bfloat16

    # conv_v(pool(dv)) + conv_i(pool(di)) == (W_vis - W_inf) @ pool(dv):
    # the two 1x1 convs are folded into one (linearity + antisymmetry).
    pool = jnp.dot(dv.astype(bf16), p_ref[...],
                   preferred_element_type=f32)                    # (R, W+H)
    conv = jnp.dot(w_ref[...], pool.astype(bf16),
                   preferred_element_type=f32)                    # (R, W+H)
    combined = jnp.dot(conv.astype(bf16), b_ref[...],
                       preferred_element_type=f32)                # (R, HW)

    attention = jax.nn.sigmoid(combined)
    # dv + di is identically zero (same as the PyTorch module); kept for
    # semantic fidelity -- a couple of lane-dense VPU ops.
    enhanced = attention * (dv + di)

    fv_ref[...] = (v + enhanced).astype(fv_ref.dtype)
    fi_ref[...] = (ir + enhanced).astype(fi_ref.dtype)


def cdm_forward(visible, infrared, w_vis, w_inf, *, grid_steps=None):
    """visible, infrared: NCHW float32; w_vis, w_inf: (C, C) 1x1 conv weights."""
    B, C, H, W = visible.shape
    HW = H * W
    dt = visible.dtype

    # Grid choice: 2 parallel steps feed both v7x TensorCores; fall back to a
    # single collapsed step if the per-step row block would not be
    # sublane-aligned (or B is odd).
    if grid_steps is None:
        grid_steps = 2 if (B % 2 == 0 and ((B // 2) * C) % 8 == 0) else 1
    assert B % grid_steps == 0
    bb = B // grid_steps              # samples per grid step
    R = bb * C                        # rows per block
    assert grid_steps == 1 or R % 8 == 0

    # Free reshapes (no transpose, no extra HBM traffic).
    v_f = visible.reshape(B * C, HW)
    i_f = infrared.reshape(B * C, HW)

    # Fused conv weight, replicated block-diagonally over the bb samples that
    # share one grid step.
    w_diff = w_vis - w_inf
    if bb > 1:
        w_diff = jnp.kron(jnp.eye(bb, dtype=w_diff.dtype), w_diff)
    w_blk = w_diff.astype(jnp.bfloat16)                       # (R, R)

    # Constant pooling / broadcast selectors, built with numpy at trace time
    # (compile-time literals).  Entries are 0, 1, 1/H, 1/W (exact in bf16 for
    # power-of-two H, W).
    bx = np.tile(np.eye(W, dtype=np.float32), (1, H))                        # (W, HW)
    by = np.kron(np.eye(H, dtype=np.float32), np.ones((1, W), np.float32))   # (H, HW)
    pool_np = np.concatenate([bx.T / H, by.T / W], axis=1)                   # (HW, W+H)
    bcast_np = np.concatenate([bx, by], axis=0)                              # (W+H, HW)
    pool_c = jnp.asarray(pool_np, dtype=jnp.bfloat16)
    bcast_c = jnp.asarray(bcast_np, dtype=jnp.bfloat16)

    spec_img = pl.BlockSpec((R, HW), lambda g: (g, 0))

    def spec_const(shape):
        return pl.BlockSpec(shape, lambda g: (0, 0))

    fv_f, fi_f = pl.pallas_call(
        cdm_kernel,
        out_shape=(jax.ShapeDtypeStruct((B * C, HW), dt),
                   jax.ShapeDtypeStruct((B * C, HW), dt)),
        grid_spec=pltpu.PrefetchScalarGridSpec(
            num_scalar_prefetch=0,
            grid=(grid_steps,),
            in_specs=[spec_img, spec_img,
                      spec_const((R, R)),
                      spec_const((HW, W + H)),
                      spec_const((W + H, HW))],
            out_specs=[spec_img, spec_img],
        ),
        input_output_aliases={0: 0, 1: 1},
        compiler_params=pltpu.CompilerParams(
            dimension_semantics=("parallel",)),
    )(v_f, i_f, w_blk, pool_c, bcast_c)

    # Free reshapes back to NCHW.
    return fv_f.reshape(B, C, H, W), fi_f.reshape(B, C, H, W)


def cdm_reference(visible, infrared, w_vis, w_inf):
    """Pure-JAX mirror of the PyTorch forward, NCHW."""
    dv = visible - infrared
    di = infrared - visible
    px_v = jnp.mean(dv, axis=2, keepdims=True)   # (B, C, 1, W)
    py_v = jnp.mean(dv, axis=3, keepdims=True)   # (B, C, H, 1)
    px_i = jnp.mean(di, axis=2, keepdims=True)
    py_i = jnp.mean(di, axis=3, keepdims=True)
    conv_v = jnp.einsum('oc,bchw->bohw', w_vis, px_v + py_v)
    conv_i = jnp.einsum('oc,bchw->bohw', w_inf, px_i + py_i)
    att = jax.nn.sigmoid(conv_v + conv_i)
    enhanced = att * (dv + di)
    return visible + enhanced, infrared + enhanced


if __name__ == "__main__":
    B, C, H, W = 2, 8, 16, 16
    key = jax.random.PRNGKey(0)
    k1, k2, k3, k4 = jax.random.split(key, 4)

    visible = jax.random.normal(k1, (B, C, H, W), dtype=jnp.float32)
    infrared = jax.random.normal(k2, (B, C, H, W), dtype=jnp.float32)

    # Deterministic 1x1 conv weights (PyTorch kaiming-uniform-like bound).
    bound = 1.0 / np.sqrt(C)
    w_vis = jax.random.uniform(k3, (C, C), jnp.float32, -bound, bound)
    w_inf = jax.random.uniform(k4, (C, C), jnp.float32, -bound, bound)

    # Compute the reference BEFORE the kernel call: the kernel donates the
    # image buffers (in-place outputs via input_output_aliases).
    fv_ref, fi_ref = cdm_reference(visible, infrared, w_vis, w_inf)
    jax.block_until_ready((fv_ref, fi_ref))

    fwd = jax.jit(cdm_forward, donate_argnums=(0, 1),
                  static_argnames=("grid_steps",))
    fv, fi = fwd(visible, infrared, w_vis, w_inf)
    jax.block_until_ready((fv, fi))

    assert fv.shape == fv_ref.shape and fi.shape == fi_ref.shape
    assert jnp.allclose(fv, fv_ref, atol=1e-5), "fused_visible mismatch"
    assert jnp.allclose(fi, fi_ref, atol=1e-5), "fused_infrared mismatch"

    print("KERNEL_OK")
</pallas_src>

<mosaic_0001>
module attributes {stable_mosaic.version = 11 : i64} {
  func.func @cdm_kernel(%arg0: i32, %arg1: memref<8x256xf32, #tpu.memory_space<vmem>>, %arg2: memref<8x256xf32, #tpu.memory_space<vmem>>, %arg3: memref<8x8xbf16, #tpu.memory_space<vmem>>, %arg4: memref<256x32xbf16, #tpu.memory_space<vmem>>, %arg5: memref<32x256xbf16, #tpu.memory_space<vmem>>, %arg6: memref<8x256xf32, #tpu.memory_space<vmem>>, %arg7: memref<8x256xf32, #tpu.memory_space<vmem>>) attributes {dimension_semantics = [#tpu.dimension_semantics<parallel>], iteration_bounds = array<i64: 2>, scalar_prefetch = 0 : i64, scratch_operands = 0 : i64, tpu.core_type = #tpu.core_type<tc>, window_params = [{transform_indices = @transform_0, window_bounds = array<i64: 8, 256>}, {transform_indices = @transform_1, window_bounds = array<i64: 8, 256>}, {pipeline_mode = #tpu.pipeline_mode<synchronous>, transform_indices = @transform_2, window_bounds = array<i64: 8, 8>}, {pipeline_mode = #tpu.pipeline_mode<synchronous>, transform_indices = @transform_3, window_bounds = array<i64: 256, 32>}, {pipeline_mode = #tpu.pipeline_mode<synchronous>, transform_indices = @transform_4, window_bounds = array<i64: 32, 256>}, {transform_indices = @transform_5, window_bounds = array<i64: 8, 256>}, {transform_indices = @transform_6, window_bounds = array<i64: 8, 256>}]} {
    %c0 = arith.constant 0 : index
    %c0_0 = arith.constant 0 : index
    %0 = vector.load %arg1[%c0, %c0_0] : memref<8x256xf32, #tpu.memory_space<vmem>>, vector<8x256xf32>
    %c0_1 = arith.constant 0 : index
    %c0_2 = arith.constant 0 : index
    %1 = vector.load %arg2[%c0_1, %c0_2] : memref<8x256xf32, #tpu.memory_space<vmem>>, vector<8x256xf32>
    %2 = arith.subf %0, %1 : vector<8x256xf32>
    %3 = arith.subf %1, %0 : vector<8x256xf32>
    %4 = arith.truncf %2 : vector<8x256xf32> to vector<8x256xbf16>
    %c0_3 = arith.constant 0 : index
    %c0_4 = arith.constant 0 : index
    %5 = vector.load %arg4[%c0_3, %c0_4] : memref<256x32xbf16, #tpu.memory_space<vmem>>, vector<256x32xbf16>
    %cst = arith.constant dense<0.000000e+00> : vector<8x32xf32>
    %6 = tpu.matmul %4, %5, %cst {dimension_numbers = #tpu.dot_dimension_numbers<[1], [0], [0], [1], [0, 0, 1, 1], [], []>} : vector<8x256xbf16>, vector<256x32xbf16>, vector<8x32xf32> -> vector<8x32xf32>
    %c0_5 = arith.constant 0 : index
    %c0_6 = arith.constant 0 : index
    %7 = vector.load %arg3[%c0_5, %c0_6] : memref<8x8xbf16, #tpu.memory_space<vmem>>, vector<8x8xbf16>
    %8 = arith.truncf %6 : vector<8x32xf32> to vector<8x32xbf16>
    %cst_7 = arith.constant dense<0.000000e+00> : vector<8x32xf32>
    %9 = tpu.matmul %7, %8, %cst_7 {dimension_numbers = #tpu.dot_dimension_numbers<[1], [0], [0], [1], [0, 0, 1, 1], [], []>} : vector<8x8xbf16>, vector<8x32xbf16>, vector<8x32xf32> -> vector<8x32xf32>
    %10 = arith.truncf %9 : vector<8x32xf32> to vector<8x32xbf16>
    %c0_8 = arith.constant 0 : index
    %c0_9 = arith.constant 0 : index
    %11 = vector.load %arg5[%c0_8, %c0_9] : memref<32x256xbf16, #tpu.memory_space<vmem>>, vector<32x256xbf16>
    %cst_10 = arith.constant dense<0.000000e+00> : vector<8x256xf32>
    %12 = tpu.matmul %10, %11, %cst_10 {dimension_numbers = #tpu.dot_dimension_numbers<[1], [0], [0], [1], [0, 0, 1, 1], [], []>} : vector<8x32xbf16>, vector<32x256xbf16>, vector<8x256xf32> -> vector<8x256xf32>
    %13 = arith.negf %12 : vector<8x256xf32>
    %14 = math.exp %13 : vector<8x256xf32>
    %cst_11 = arith.constant 1.000000e+00 : f32
    %15 = vector.broadcast %cst_11 : f32 to vector<8x256xf32>
    %16 = arith.addf %15, %14 : vector<8x256xf32>
    %17 = arith.divf %15, %16 : vector<8x256xf32>
    %18 = arith.addf %2, %3 : vector<8x256xf32>
    %19 = arith.mulf %17, %18 : vector<8x256xf32>
    %20 = arith.addf %0, %19 : vector<8x256xf32>
    %c0_12 = arith.constant 0 : index
    %c0_13 = arith.constant 0 : index
    %21 = vector.load %arg6[%c0_12, %c0_13] : memref<8x256xf32, #tpu.memory_space<vmem>>, vector<8x256xf32>
    tpu.vector_store %arg6[%c0_12, %c0_13], %20 {strides = array<i32>} : memref<8x256xf32, #tpu.memory_space<vmem>>, vector<8x256xf32>,
    %22 = arith.addf %1, %19 : vector<8x256xf32>
    %c0_14 = arith.constant 0 : index
    %c0_15 = arith.constant 0 : index
    %23 = vector.load %arg7[%c0_14, %c0_15] : memref<8x256xf32, #tpu.memory_space<vmem>>, vector<8x256xf32>
    tpu.vector_store %arg7[%c0_14, %c0_15], %22 {strides = array<i32>} : memref<8x256xf32, #tpu.memory_space<vmem>>, vector<8x256xf32>,
    return
  }
  func.func @transform_0(%arg0: i32) -> (i32, i32) {
    %c0_i32 = arith.constant 0 : i32
    %c0_i32_0 = arith.constant 0 : i32
    return %arg0, %c0_i32 : i32, i32
  }
  func.func @transform_1(%arg0: i32) -> (i32, i32) {
    %c0_i32 = arith.constant 0 : i32
    %c0_i32_0 = arith.constant 0 : i32
    return %arg0, %c0_i32 : i32, i32
  }
  func.func @transform_2(%arg0: i32) -> (i32, i32) {
    %c0_i32 = arith.constant 0 : i32
    %c0_i32_0 = arith.constant 0 : i32
    %c0_i32_1 = arith.constant 0 : i32
    return %c0_i32, %c0_i32_0 : i32, i32
  }
  func.func @transform_3(%arg0: i32) -> (i32, i32) {
    %c0_i32 = arith.constant 0 : i32
    %c0_i32_0 = arith.constant 0 : i32
    %c0_i32_1 = arith.constant 0 : i32
    return %c0_i32, %c0_i32_0 : i32, i32
  }
  func.func @transform_4(%arg0: i32) -> (i32, i32) {
    %c0_i32 = arith.constant 0 : i32
    %c0_i32_0 = arith.constant 0 : i32
    %c0_i32_1 = arith.constant 0 : i32
    return %c0_i32, %c0_i32_0 : i32, i32
  }
  func.func @transform_5(%arg0: i32) -> (i32, i32) {
    %c0_i32 = arith.constant 0 : i32
    %c0_i32_0 = arith.constant 0 : i32
    return %arg0, %c0_i32 : i32, i32
  }
  func.func @transform_6(%arg0: i32) -> (i32, i32) {
    %c0_i32 = arith.constant 0 : i32
    %c0_i32_0 = arith.constant 0 : i32
    return %arg0, %c0_i32 : i32, i32
  }
}

</mosaic_0001>

<llo_original>
// kernel: cdm_forward.1
$region0: #{cdm_forward.1}
  #allocation0 [shape = 'u32[]', space=smem, size = 0x4, offset = 0x4, fixed_abs, tag = 'smem constant byte address 0x4 - core index']
  #allocation1 [shape = 'u32[144,128]{1,0:T(1,128)}', space=vmem, size = 0x12000, scoped, tag = 'internal scratch']
  %s0 = inlined_call_operand.vmem [shape: f32[16,256], index: 0, kind: input, shape index: {}, may-alias: {0,5}]
  %s1 = inlined_call_operand.vmem [shape: f32[16,256], index: 1, kind: input, shape index: {}, may-alias: {1,6}]
  %s2 = inlined_call_operand.vmem [shape: bf16[8,8], index: 2, kind: input, shape index: {}]
  %s3 = inlined_call_operand.vmem [shape: bf16[256,32], index: 3, kind: input, shape index: {}]
  %s4 = inlined_call_operand.vmem [shape: bf16[32,256], index: 4, kind: input, shape index: {}]
  %s5 = inlined_call_operand.vmem [shape: f32[16,256], index: 5, kind: output, shape index: {0}, may-alias: {0,5}]
  %s6 = inlined_call_operand.vmem [shape: f32[16,256], index: 6, kind: output, shape index: {1}, may-alias: {1,6}]
  %7 = xla_tuple %s5, %s6
  %s8 = sld [smem:[#allocation0]]
  $region61: #{cdm_forward.1} parent=0
    _
  %s10 = ssub.s32 1, %s8
  %s11 = scalar_select 0, %s10, %s8
  loop: start=0, step=1, limit=4
  $region2: #{cdm_forward.1} parent=0 // loop_pre_header
    _
  $region3: #{cdm_forward.1} parent=0 // loop_header
    %s13 = sphi 0, %s17
    %p14 = scmp.ge.s32.totalorder %s13, 4
    %s23 = sphi 0, %s25
    %s26 = sphi 0, %s23
    %s27 = sphi 0, %s26
    %s43 = sphi 0, %s27
    %s49 = sphi 0, %s51
    %s52 = sphi 0, %s49
    %s53 = sphi 0, %s52
    %s69 = sphi 0, %s53
    %s73 = sphi 0, %s73
    %s75 = sphi 0, %s73
    %s76 = sphi 0, %s75
    %s90 = sphi 0, %s76
    %s94 = sphi 0, %s94
    %s96 = sphi 0, %s94
    %s97 = sphi 0, %s96
    %s111 = sphi 0, %s97
    %s115 = sphi 0, %s115
    %s117 = sphi 0, %s115
    %s118 = sphi 0, %s117
    %s132 = sphi 0, %s118
    %s138 = sphi 0, %s140
    %s141 = sphi 0, %s138
    %s142 = sphi 0, %s141
    %s158 = sphi 0, %s142
    %s164 = sphi 0, %s166
    %s167 = sphi 0, %s164
    %s168 = sphi 0, %s167
    %s184 = sphi 0, %s168
  $region4: #{cdm_forward.1} parent=0 // loop_header_branch
    %16 = sbr.rel (%p14) target = $region8
  $region5: #{cdm_forward.1} parent=0 // loop_body
    %s18 = ssub.s32 %s13, 1
    %s19 = ssub.s32 %s13, 2
    %s20 = sadd.s32 %s13, 1
    %s21 = ssub.s32 %s13, %s20
    %p22 = scmp.eq.s32.totalorder %s21, 0
    %s24 = sadd.s32 %s23, 1
    %s25 = scalar_select %p22, %s23, %s24
    %p28 = pneg %p22
    %p29 = scmp.eq.s32.totalorder %s13, 1
    %p30 = por %p28, %p29
    %p31 = scmp.ne.s32.totalorder %s23, %s26
    %p32 = scmp.eq.s32.totalorder %s13, 0
    %p33 = por %p31, %p32
    %p34 = scmp.ne.s32.totalorder %s23, %s26
    %p35 = scmp.eq.s32.totalorder %s18, 1
    %p36 = por %p34, %p35
    %p37 = scmp.ne.s32.totalorder %s26, %s27
    %p38 = scmp.eq.s32.totalorder %s18, 0
    %p39 = por %p37, %p38
    %p40 = scmp.ne.s32.totalorder %s26, %s27
    %p41 = scmp.eq.s32.totalorder %s19, 1
    %p42 = por %p40, %p41
    %p44 = scmp.ne.s32.totalorder %s27, %s43
    %p45 = scmp.eq.s32.totalorder %s19, 0
    %p46 = por %p44, %p45
    %s47 = ssub.s32 %s13, %s20
    %p48 = scmp.eq.s32.totalorder %s47, 0
    %s50 = sadd.s32 %s49, 1
    %s51 = scalar_select %p48, %s49, %s50
    %p54 = pneg %p48
    %p55 = scmp.eq.s32.totalorder %s13, 1
    %p56 = por %p54, %p55
    %p57 = scmp.ne.s32.totalorder %s49, %s52
    %p58 = scmp.eq.s32.totalorder %s13, 0
    %p59 = por %p57, %p58
    %p60 = scmp.ne.s32.totalorder %s49, %s52
    %p61 = scmp.eq.s32.totalorder %s18, 1
    %p62 = por %p60, %p61
    %p63 = scmp.ne.s32.totalorder %s52, %s53
    %p64 = scmp.eq.s32.totalorder %s18, 0
    %p65 = por %p63, %p64
    %p66 = scmp.ne.s32.totalorder %s52, %s53
    %p67 = scmp.eq.s32.totalorder %s19, 1
    %p68 = por %p66, %p67
    %p70 = scmp.ne.s32.totalorder %s53, %s69
    %p71 = scmp.eq.s32.totalorder %s19, 0
    %p72 = por %p70, %p71
    %s74 = sadd.s32 %s73, 1
    %p77 = scmp.eq.s32.totalorder %s13, 1
    %p78 = scmp.ne.s32.totalorder %s73, %s75
    %p79 = scmp.eq.s32.totalorder %s13, 0
    %p80 = por %p78, %p79
    %p81 = scmp.ne.s32.totalorder %s73, %s75
    %p82 = scmp.eq.s32.totalorder %s18, 1
    %p83 = por %p81, %p82
    %p84 = scmp.ne.s32.totalorder %s75, %s76
    %p85 = scmp.eq.s32.totalorder %s18, 0
    %p86 = por %p84, %p85
    %p87 = scmp.ne.s32.totalorder %s75, %s76
    %p88 = scmp.eq.s32.totalorder %s19, 1
    %p89 = por %p87, %p88
    %p91 = scmp.ne.s32.totalorder %s76, %s90
    %p92 = scmp.eq.s32.totalorder %s19, 0
    %p93 = por %p91, %p92
    %s95 = sadd.s32 %s94, 1
    %p98 = scmp.eq.s32.totalorder %s13, 1
    %p99 = scmp.ne.s32.totalorder %s94, %s96
    %p100 = scmp.eq.s32.totalorder %s13, 0
    %p101 = por %p99, %p100
    %p102 = scmp.ne.s32.totalorder %s94, %s96
    %p103 = scmp.eq.s32.totalorder %s18, 1
    %p104 = por %p102, %p103
    %p105 = scmp.ne.s32.totalorder %s96, %s97
    %p106 = scmp.eq.s32.totalorder %s18, 0
    %p107 = por %p105, %p106
    %p108 = scmp.ne.s32.totalorder %s96, %s97
    %p109 = scmp.eq.s32.totalorder %s19, 1
    %p110 = por %p108, %p109
    %p112 = scmp.ne.s32.totalorder %s97, %s111
    %p113 = scmp.eq.s32.totalorder %s19, 0
    %p114 = por %p112, %p113
    %s116 = sadd.s32 %s115, 1
    %p119 = scmp.eq.s32.totalorder %s13, 1
    %p120 = scmp.ne.s32.totalorder %s115, %s117
    %p121 = scmp.eq.s32.totalorder %s13, 0
    %p122 = por %p120, %p121
    %p123 = scmp.ne.s32.totalorder %s115, %s117
    %p124 = scmp.eq.s32.totalorder %s18, 1
    %p125 = por %p123, %p124
    %p126 = scmp.ne.s32.totalorder %s117, %s118
    %p127 = scmp.eq.s32.totalorder %s18, 0
    %p128 = por %p126, %p127
    %p129 = scmp.ne.s32.totalorder %s117, %s118
    %p130 = scmp.eq.s32.totalorder %s19, 1
    %p131 = por %p129, %p130
    %p133 = scmp.ne.s32.totalorder %s118, %s132
    %p134 = scmp.eq.s32.totalorder %s19, 0
    %p135 = por %p133, %p134
    %s136 = ssub.s32 %s13, %s20
    %p137 = scmp.eq.s32.totalorder %s136, 0
    %s139 = sadd.s32 %s138, 1
    %s140 = scalar_select %p137, %s138, %s139
    %p143 = pneg %p137
    %p144 = scmp.eq.s32.totalorder %s13, 1
    %p145 = por %p143, %p144
    %p146 = scmp.ne.s32.totalorder %s138, %s141
    %p147 = scmp.eq.s32.totalorder %s13, 0
    %p148 = por %p146, %p147
    %p149 = scmp.ne.s32.totalorder %s138, %s141
    %p150 = scmp.eq.s32.totalorder %s18, 1
    %p151 = por %p149, %p150
    %p152 = scmp.ne.s32.totalorder %s141, %s142
    %p153 = scmp.eq.s32.totalorder %s18, 0
    %p154 = por %p152, %p153
    %p155 = scmp.ne.s32.totalorder %s141, %s142
    %p156 = scmp.eq.s32.totalorder %s19, 1
    %p157 = por %p155, %p156
    %p159 = scmp.ne.s32.totalorder %s142, %s158
    %p160 = scmp.eq.s32.totalorder %s19, 0
    %p161 = por %p159, %p160
    %s162 = ssub.s32 %s13, %s20
    %p163 = scmp.eq.s32.totalorder %s162, 0
    %s165 = sadd.s32 %s164, 1
    %s166 = scalar_select %p163, %s164, %s165
    %p169 = pneg %p163
    %p170 = scmp.eq.s32.totalorder %s13, 1
    %p171 = por %p169, %p170
    %p172 = scmp.ne.s32.totalorder %s164, %s167
    %p173 = scmp.eq.s32.totalorder %s13, 0
    %p174 = por %p172, %p173
    %p175 = scmp.ne.s32.totalorder %s164, %s167
    %p176 = scmp.eq.s32.totalorder %s18, 1
    %p177 = por %p175, %p176
    %p178 = scmp.ne.s32.totalorder %s167, %s168
    %p179 = scmp.eq.s32.totalorder %s18, 0
    %p180 = por %p178, %p179
    %p181 = scmp.ne.s32.totalorder %s167, %s168
    %p182 = scmp.eq.s32.totalorder %s19, 1
    %p183 = por %p181, %p182
    %p185 = scmp.ne.s32.totalorder %s168, %s184
    %p186 = scmp.eq.s32.totalorder %s19, 0
    %p187 = por %p185, %p186
    %p188 = scmp.le.s32.totalorder 1, %s13
    %p189 = scmp.lt.s32.totalorder %s13, 3
    %p190 = pnand %p188, %p189
    %p191 = pneg %p190
    // Predicated region
    $region9: #{cdm_forward.1} parent=5 // pred_check
      _
    $region10: #{cdm_forward.1} parent=5 // pred_check_branch
      %193 = sbr.rel (%p190) target = $region12
    $region11: #{cdm_forward.1} parent=5 // pred_region
      %s194 = ssub.s32 %s13, 1
      // Predicated region
      $region13: #{cdm_forward.1} parent=11 // pred_check
        %p195 = pneg %p86
      $region14: #{cdm_forward.1} parent=11 // pred_check_branch
        %197 = sbr.rel (%p195) target = $region16
      $region15: #{cdm_forward.1} parent=11 // pred_region
        _
      $region16: #{cdm_forward.1} parent=11 // pred_fallthru
        _
      // Predicated region
      $region17: #{cdm_forward.1} parent=11 // pred_check
        %p198 = pneg %p107
      $region18: #{cdm_forward.1} parent=11 // pred_check_branch
        %200 = sbr.rel (%p198) target = $region20
      $region19: #{cdm_forward.1} parent=11 // pred_region
        _
      $region20: #{cdm_forward.1} parent=11 // pred_fallthru
        _
      // Predicated region
      $region21: #{cdm_forward.1} parent=11 // pred_check
        %p201 = pneg %p128
      $region22: #{cdm_forward.1} parent=11 // pred_check_branch
        %203 = sbr.rel (%p201) target = $region24
      $region23: #{cdm_forward.1} parent=11 // pred_region
        _
      $region24: #{cdm_forward.1} parent=11 // pred_fallthru
        _
    $region12: #{cdm_forward.1} parent=5 // pred_fallthru
      _
    %p204 = scmp.lt.s32.totalorder %s13, 2
    // Predicated region
    $region25: #{cdm_forward.1} parent=5 // pred_check
      %p205 = pneg %p204
    $region26: #{cdm_forward.1} parent=5 // pred_check_branch
      %207 = sbr.rel (%p205) target = $region28
    $region27: #{cdm_forward.1} parent=5 // pred_region
      // Predicated region
      $region29: #{cdm_forward.1} parent=27 // pred_check
        %p208 = pneg %p33
      $region30: #{cdm_forward.1} parent=27 // pred_check_branch
        %210 = sbr.rel (%p208) target = $region32
      $region31: #{cdm_forward.1} parent=27 // pred_region
        %p211 = scmp.lt.s32.totalorder %s13, 1
        %s212 = scalar_select %p211, %s13, 1
        %s213 = smul.addr %s212, 2
        %s214 = smul.addr %s213, 8
        %s215 = scalar_lea.vmem %s0, %s214
      $region32: #{cdm_forward.1} parent=27 // pred_fallthru
        _
      // Predicated region
      $region33: #{cdm_forward.1} parent=27 // pred_check
        %p216 = pneg %p59
      $region34: #{cdm_forward.1} parent=27 // pred_check_branch
        %218 = sbr.rel (%p216) target = $region36
      $region35: #{cdm_forward.1} parent=27 // pred_region
        %p219 = scmp.lt.s32.totalorder %s13, 1
        %s220 = scalar_select %p219, %s13, 1
        %s221 = smul.addr %s220, 2
        %s222 = smul.addr %s221, 8
        %s223 = scalar_lea.vmem %s1, %s222
      $region36: #{cdm_forward.1} parent=27 // pred_fallthru
        _
    $region28: #{cdm_forward.1} parent=5 // pred_fallthru
      _
    %p224 = scmp.le.s32.totalorder 1, %s13
    %p225 = scmp.lt.s32.totalorder %s13, 3
    %p226 = pnand %p224, %p225
    %p227 = pneg %p226
    // Predicated region
    $region37: #{cdm_forward.1} parent=5 // pred_check
      _
    $region38: #{cdm_forward.1} parent=5 // pred_check_branch
      %229 = sbr.rel (%p226) target = $region40
    $region39: #{cdm_forward.1} parent=5 // pred_region
      %s230 = ssub.s32 %s13, 1
      %p231 = scmp.lt.s32.totalorder %s18, 1
      %s232 = scalar_select %p231, %s18, 1
      %s233 = smul.addr %s232, 2
      %s234 = smul.addr %s233, 8
      %s235 = scalar_lea.vmem %s0, %s234
      %p236 = pneg %p39
      %p237 = pneg %p36
      %p238 = scmp.lt.s32.totalorder %s18, 1
      %s239 = scalar_select %p238, %s18, 1
      %s240 = smul.addr %s239, 2
      %s241 = smul.addr %s240, 8
      %s242 = scalar_lea.vmem %s1, %s241
      %p243 = pneg %p65
      %p244 = pneg %p62
      %p245 = pneg %p86
      %p246 = pneg %p83
      %p247 = pneg %p107
      %p248 = pneg %p104
      %p249 = pneg %p128
      %p250 = pneg %p125
      %p251 = pneg %p154
      %p252 = pneg %p151
      %p253 = scmp.lt.s32.totalorder %s18, 1
      %s254 = scalar_select %p253, %s18, 1
      %s255 = smul.addr %s254, 2
      %s256 = smul.addr %s255, 8
      %s257 = scalar_lea.vmem %s5, %s256
      %p258 = pneg %p180
      %p259 = pneg %p177
      %p260 = scmp.lt.s32.totalorder %s18, 1
      %s261 = scalar_select %p260, %s18, 1
      %s262 = smul.addr %s261, 2
      %s263 = smul.addr %s262, 8
      %s264 = scalar_lea.vmem %s6, %s263
      %p265 = scmp.lt.s32.totalorder %s18, 1
      %s266 = scalar_select %p265, %s18, 1
      %s267 = smul.addr %s266, 2
      %s268 = smul.addr %s267, 8
      %s269 = scalar_lea.vmem %s0, %s268
      %p270 = scmp.lt.s32.totalorder %s18, 1
      %s271 = scalar_select %p270, %s18, 1
      %s272 = smul.addr %s271, 2
      %s273 = smul.addr %s272, 8
      %s274 = scalar_lea.vmem %s1, %s273
      %p275 = scmp.lt.s32.totalorder %s18, 1
      %s276 = scalar_select %p275, %s18, 1
      %s277 = smul.addr %s276, 2
      %s278 = smul.addr %s277, 8
      %s279 = scalar_lea.vmem %s5, %s278
      %p280 = scmp.lt.s32.totalorder %s18, 1
      %s281 = scalar_select %p280, %s18, 1
      %s282 = smul.addr %s281, 2
      %s283 = smul.addr %s282, 8
      %s284 = scalar_lea.vmem %s6, %s283
      %v286 = vld [vmem:[%s269] sm:$0xff]
      %v287 = vld [vmem:[%s269 + $0x8] sm:$0xff]
      %v288 = vld [vmem:[%s274] sm:$0xff]
      %v289 = vld [vmem:[%s274 + $0x8] sm:$0xff]
      %v290 = vsub.f32 %v286, %v288
      %v291 = vsub.f32 %v287, %v289
      %v292 = vsub.f32 %v288, %v286
      %v293 = vsub.f32 %v289, %v287
      %v294 = vpack.c.bf16 %v290, %v290
      %v295 = vpack.c.bf16 %v291, %v291
      %v296 = vld [vmem:[%s3] sm:$0xf]
      %v297 = vld [vmem:[%s3 + $0x4] sm:$0xf]
      %v298 = vld [vmem:[%s3 + $0x8] sm:$0xf]
      %v299 = vld [vmem:[%s3 + $0xc] sm:$0xf]
      %v300 = vld [vmem:[%s3 + $0x10] sm:$0xf]
      %v301 = vld [vmem:[%s3 + $0x14] sm:$0xf]
      %v302 = vld [vmem:[%s3 + $0x18] sm:$0xf]
      %v303 = vld [vmem:[%s3 + $0x1c] sm:$0xf]
      %v304 = vld [vmem:[%s3 + $0x20] sm:$0xf]
      %v305 = vld [vmem:[%s3 + $0x24] sm:$0xf]
      %v306 = vld [vmem:[%s3 + $0x28] sm:$0xf]
      %v307 = vld [vmem:[%s3 + $0x2c] sm:$0xf]
      %v308 = vld [vmem:[%s3 + $0x30] sm:$0xf]
      %v309 = vld [vmem:[%s3 + $0x34] sm:$0xf]
      %v310 = vld [vmem:[%s3 + $0x38] sm:$0xf]
      %v311 = vld [vmem:[%s3 + $0x3c] sm:$0xf]
      %v312 = vld [vmem:[%s3 + $0x40] sm:$0xf]
      %v313 = vld [vmem:[%s3 + $0x44] sm:$0xf]
      %v314 = vld [vmem:[%s3 + $0x48] sm:$0xf]
      %v315 = vld [vmem:[%s3 + $0x4c] sm:$0xf]
      %v316 = vld [vmem:[%s3 + $0x50] sm:$0xf]
      %v317 = vld [vmem:[%s3 + $0x54] sm:$0xf]
      %v318 = vld [vmem:[%s3 + $0x58] sm:$0xf]
      %v319 = vld [vmem:[%s3 + $0x5c] sm:$0xf]
      %v320 = vld [vmem:[%s3 + $0x60] sm:$0xf]
      %v321 = vld [vmem:[%s3 + $0x64] sm:$0xf]
      %v322 = vld [vmem:[%s3 + $0x68] sm:$0xf]
      %v323 = vld [vmem:[%s3 + $0x6c] sm:$0xf]
      %v324 = vld [vmem:[%s3 + $0x70] sm:$0xf]
      %v325 = vld [vmem:[%s3 + $0x74] sm:$0xf]
      %v326 = vld [vmem:[%s3 + $0x78] sm:$0xf]
      %v327 = vld [vmem:[%s3 + $0x7c] sm:$0xf]
      %v360 = vunpack.c.l.b16 %v296
      %v361 = vunpack.c.l.b16 %v297
      %v362 = vunpack.c.l.b16 %v298
      %v363 = vunpack.c.l.b16 %v299
      %v364 = vunpack.c.l.b16 %v300
      %v365 = vunpack.c.l.b16 %v301
      %v366 = vunpack.c.l.b16 %v302
      %v367 = vunpack.c.l.b16 %v303
      %v368 = vunpack.c.l.b16 %v304
      %v369 = vunpack.c.l.b16 %v305
      %v370 = vunpack.c.l.b16 %v306
      %v371 = vunpack.c.l.b16 %v307
      %v372 = vunpack.c.l.b16 %v308
      %v373 = vunpack.c.l.b16 %v309
      %v374 = vunpack.c.l.b16 %v310
      %v375 = vunpack.c.l.b16 %v311
      %v376 = vunpack.c.l.b16 %v312
      %v377 = vunpack.c.l.b16 %v313
      %v378 = vunpack.c.l.b16 %v314
      %v379 = vunpack.c.l.b16 %v315
      %v380 = vunpack.c.l.b16 %v316
      %v381 = vunpack.c.l.b16 %v317
      %v382 = vunpack.c.l.b16 %v318
      %v383 = vunpack.c.l.b16 %v319
      %v384 = vunpack.c.l.b16 %v320
      %v385 = vunpack.c.l.b16 %v321
      %v386 = vunpack.c.l.b16 %v322
      %v387 = vunpack.c.l.b16 %v323
      %v388 = vunpack.c.l.b16 %v324
      %v389 = vunpack.c.l.b16 %v325
      %v390 = vunpack.c.l.b16 %v326
      %v391 = vunpack.c.l.b16 %v327
      %v392 = vpack.c.b16 %v361, %v360
      %v393 = vpack.c.b16 %v363, %v362
      %v394 = vpack.c.b16 %v365, %v364
      %v395 = vpack.c.b16 %v367, %v366
      %v396 = vpack.c.b16 %v369, %v368
      %v397 = vpack.c.b16 %v371, %v370
      %v398 = vpack.c.b16 %v373, %v372
      %v399 = vpack.c.b16 %v375, %v374
      %v400 = vpack.c.b16 %v377, %v376
      %v401 = vpack.c.b16 %v379, %v378
      %v402 = vpack.c.b16 %v381, %v380
      %v403 = vpack.c.b16 %v383, %v382
      %v404 = vpack.c.b16 %v385, %v384
      %v405 = vpack.c.b16 %v387, %v386
      %v406 = vpack.c.b16 %v389, %v388
      %v407 = vpack.c.b16 %v391, %v390
      %424 = vmatprep.subr.bf16.mxu0 0
      %425 = vmatpush1.bf16.msra.mxu0 %v392
      %426 = vmatprep.subr.bf16.mxu0 0
      %427 = vmatpush1.bf16.msra.mxu0 %v393
      %428 = vmatprep.subr.bf16.mxu0 0
      %429 = vmatpush1.bf16.msra.mxu0 %v394
      %430 = vmatprep.subr.bf16.mxu0 0
      %431 = vmatpush1.bf16.msra.mxu0 %v395
      %432 = vmatprep.subr.bf16.mxu0 0
      %433 = vmatpush1.bf16.msra.mxu0 %v396
      %434 = vmatprep.subr.bf16.mxu0 0
      %435 = vmatpush1.bf16.msra.mxu0 %v397
      %436 = vmatprep.subr.bf16.mxu0 0
      %437 = vmatpush1.bf16.msra.mxu0 %v398
      %438 = vmatprep.subr.bf16.mxu0 0
      %439 = vmatpush1.bf16.msra.mxu0 %v399
      %440 = vmatprep.subr.bf16.mxu0 0
      %441 = vmatpush1.bf16.msra.mxu0 %v400
      %442 = vmatprep.subr.bf16.mxu0 0
      %443 = vmatpush1.bf16.msra.mxu0 %v401
      %444 = vmatprep.subr.bf16.mxu0 0
      %445 = vmatpush1.bf16.msra.mxu0 %v402
      %446 = vmatprep.subr.bf16.mxu0 0
      %447 = vmatpush1.bf16.msra.mxu0 %v403
      %448 = vmatprep.subr.bf16.mxu0 0
      %449 = vmatpush1.bf16.msra.mxu0 %v404
      %450 = vmatprep.subr.bf16.mxu0 0
      %451 = vmatpush1.bf16.msra.mxu0 %v405
      %452 = vmatprep.subr.bf16.mxu0 0
      %453 = vmatpush1.bf16.msra.mxu0 %v406
      %454 = vmatprep.subr.bf16.mxu0 0
      %455 = vmatpush1.bf16.msra.mxu0 %v407
      %456 = vmatprep.mubr.bf16.mxu0 %v295
      %457 = vmatmul.mubr.bf16.gmra.mrb[0].mxu0 %v294
      %v458 = vpop.f32.mrb[0].mxu0
      %v459 = vadd.f32 0.0, %v458
      %v460 = vpop.f32.mrb[0].mxu0
      %v461 = vpop.f32.mrb[0].mxu0
      %v462 = vpop.f32.mrb[0].mxu0
      %463 = vdwg.mxu0
      %v464 = vld [vmem:[%s2] sm:$0xf]
      %v465 = vpack.c.bf16 %v459, %v459
      %vm466 = vcmask 64512
      %v468 = vsel %vm466, %v464, 0
      %vm470 = vcmask 1043456
      %v472 = vsel %vm470, %v465, 0
      %474 = vmatprep.subr.bf16.mxu0 0
      %475 = vmatpush1.bf16.msra.mxu0 %v472
      %476 = vmatprep.subr.bf16.mxu0 0
      %477 = vmatpush1.bf16.msra.mxu0 0
      %478 = vmatprep.subr.bf16.mxu0 0
      %479 = vmatpush1.bf16.msra.mxu0 0
      %480 = vmatprep.subr.bf16.mxu0 0
      %481 = vmatpush1.bf16.msra.mxu0 0
      %482 = vmatprep.subr.bf16.mxu0 0
      %483 = vmatpush1.bf16.msra.mxu0 0
      %484 = vmatprep.subr.bf16.mxu0 0
      %485 = vmatpush1.bf16.msra.mxu0 0
      %486 = vmatprep.subr.bf16.mxu0 0
      %487 = vmatpush1.bf16.msra.mxu0 0
      %488 = vmatprep.subr.bf16.mxu0 0
      %489 = vmatpush1.bf16.msra.mxu0 0
      %490 = vmatprep.subr.bf16.mxu0 0
      %491 = vmatpush1.bf16.msra.mxu0 0
      %492 = vmatprep.subr.bf16.mxu0 0
      %493 = vmatpush1.bf16.msra.mxu0 0
      %494 = vmatprep.subr.bf16.mxu0 0
      %495 = vmatpush1.bf16.msra.mxu0 0
      %496 = vmatprep.subr.bf16.mxu0 0
      %497 = vmatpush1.bf16.msra.mxu0 0
      %498 = vmatprep.subr.bf16.mxu0 0
      %499 = vmatpush1.bf16.msra.mxu0 0
      %500 = vmatprep.subr.bf16.mxu0 0
      %501 = vmatpush1.bf16.msra.mxu0 0
      %502 = vmatprep.subr.bf16.mxu0 0
      %503 = vmatpush1.bf16.msra.mxu0 0
      %504 = vmatprep.subr.bf16.mxu0 0
      %505 = vmatpush1.bf16.msra.mxu0 0
      %506 = vmatprep.mubr.bf16.mxu0 0
      %507 = vmatmul.mubr.bf16.gmra.mrb[0].mxu0 %v468
      %v508 = vpop.f32.mrb[0].mxu0
      %v509 = vadd.f32 0.0, %v508
      %v510 = vpop.f32.mrb[0].mxu0
      %v511 = vpop.f32.mrb[0].mxu0
      %v512 = vpop.f32.mrb[0].mxu0
      %513 = vdwg.mxu0
      %v514 = vpack.c.bf16 %v509, %v509
      %v515 = vld [vmem:[%s4] sm:$0xff]
      %v516 = vld [vmem:[%s4 + $0x8] sm:$0xff]
      %v517 = vld [vmem:[%s4 + $0x10] sm:$0xff]
      %v518 = vld [vmem:[%s4 + $0x18] sm:$0xff]
      %v523 = vunpack.c.l.b16 %v515
      %v524 = vunpack.c.h.b16 %v515
      %v525 = vunpack.c.l.b16 %v516
      %v526 = vunpack.c.h.b16 %v516
      %v527 = vunpack.c.l.b16 %v517
      %v528 = vunpack.c.h.b16 %v517
      %v529 = vunpack.c.l.b16 %v518
      %v530 = vunpack.c.h.b16 %v518
      %v531 = vpack.c.b16 %v525, %v523
      %v532 = vpack.c.b16 %v526, %v524
      %v533 = vpack.c.b16 %v529, %v527
      %v534 = vpack.c.b16 %v530, %v528
      %vm539 = vcmask 261120
      %v541 = vsel %vm539, %v514, 0
      %543 = vmatprep.subr.bf16.mxu0 %v532
      %544 = vmatpush1.bf16.msra.mxu0 %v531
      %545 = vmatprep.subr.bf16.mxu0 %v534
      %546 = vmatpush1.bf16.msra.mxu0 %v533
      %547 = vmatprep.subr.bf16.mxu0 0
      %548 = vmatpush1.bf16.msra.mxu0 0
      %549 = vmatprep.subr.bf16.mxu0 0
      %550 = vmatpush1.bf16.msra.mxu0 0
      %551 = vmatprep.subr.bf16.mxu0 0
      %552 = vmatpush1.bf16.msra.mxu0 0
      %553 = vmatprep.subr.bf16.mxu0 0
      %554 = vmatpush1.bf16.msra.mxu0 0
      %555 = vmatprep.subr.bf16.mxu0 0
      %556 = vmatpush1.bf16.msra.mxu0 0
      %557 = vmatprep.subr.bf16.mxu0 0
      %558 = vmatpush1.bf16.msra.mxu0 0
      %559 = vmatprep.subr.bf16.mxu0 0
      %560 = vmatpush1.bf16.msra.mxu0 0
      %561 = vmatprep.subr.bf16.mxu0 0
      %562 = vmatpush1.bf16.msra.mxu0 0
      %563 = vmatprep.subr.bf16.mxu0 0
      %564 = vmatpush1.bf16.msra.mxu0 0
      %565 = vmatprep.subr.bf16.mxu0 0
      %566 = vmatpush1.bf16.msra.mxu0 0
      %567 = vmatprep.subr.bf16.mxu0 0
      %568 = vmatpush1.bf16.msra.mxu0 0
      %569 = vmatprep.subr.bf16.mxu0 0
      %570 = vmatpush1.bf16.msra.mxu0 0
      %571 = vmatprep.subr.bf16.mxu0 0
      %572 = vmatpush1.bf16.msra.mxu0 0
      %573 = vmatprep.subr.bf16.mxu0 0
      %574 = vmatpush1.bf16.msra.mxu0 0
      %575 = vmatprep.mubr.bf16.mxu0 0
      %576 = vmatmul.mubr.bf16.gmra.mrb[0].mxu0 %v541
      %v577 = vpop.f32.mrb[0].mxu0
      %v578 = vadd.f32 0.0, %v577
      %v579 = vpop.f32.mrb[0].mxu0
      %v580 = vadd.f32 0.0, %v579
      %v581 = vpop.f32.mrb[0].mxu0
      %v582 = vpop.f32.mrb[0].mxu0
      %583 = vdwg.mxu0
      %v584 = vxor.u32 %v578, 2147483648
      %v585 = vxor.u32 %v580, 2147483648
      %v586 = vmul.f32 %v584, 1.442695
      %v587 = vpow.pop %v586
      %v588 = vmul.f32 %v585, 1.442695
      %v589 = vpow.pop %v588
      %v590 = vadd.f32 %v587, 1.0
      %v591 = vadd.f32 %v589, 1.0
      %v592 = vrcp.pop %v590
      %v593 = vmul.f32 1.0, %v592
      %v594 = vrcp.pop %v591
      %v595 = vmul.f32 1.0, %v594
      %v596 = vadd.f32 %v290, %v292
      %v597 = vadd.f32 %v291, %v293
      %v598 = vmul.f32 %v593, %v596
      %v599 = vmul.f32 %v595, %v597
      %v600 = vadd.f32 %v286, %v598
      %v601 = vadd.f32 %v287, %v599
      %602 = vst [vmem:[%s279] sm:$0xff] %v600
      %603 = vst [vmem:[%s279 + $0x8] sm:$0xff] %v601
      %v604 = vadd.f32 %v288, %v598
      %v605 = vadd.f32 %v289, %v599
      %606 = vst [vmem:[%s284] sm:$0xff] %v604
      %607 = vst [vmem:[%s284 + $0x8] sm:$0xff] %v605
      %p608 = scmp.lt.s32.totalorder %s18, 1
      %s609 = scalar_select %p608, %s18, 1
      %s610 = smul.addr %s609, 2
      %s611 = smul.addr %s610, 8
      %s612 = scalar_lea.vmem %s5, %s611
      %p613 = scmp.lt.s32.totalorder %s18, 1
      %s614 = scalar_select %p613, %s18, 1
      %s615 = smul.addr %s614, 2
      %s616 = smul.addr %s615, 8
      %s617 = scalar_lea.vmem %s6, %s616
      // Predicated region
      $region41: #{cdm_forward.1} parent=39 // pred_check
        %p618 = pneg %p151
      $region42: #{cdm_forward.1} parent=39 // pred_check_branch
        %620 = sbr.rel (%p618) target = $region44
      $region43: #{cdm_forward.1} parent=39 // pred_region
        _
      $region44: #{cdm_forward.1} parent=39 // pred_fallthru
        _
      // Predicated region
      $region45: #{cdm_forward.1} parent=39 // pred_check
        %p621 = pneg %p177
      $region46: #{cdm_forward.1} parent=39 // pred_check_branch
        %623 = sbr.rel (%p621) target = $region48
      $region47: #{cdm_forward.1} parent=39 // pred_region
        _
      $region48: #{cdm_forward.1} parent=39 // pred_fallthru
        _
    $region40: #{cdm_forward.1} parent=5 // pred_fallthru
      _
    %p624 = scmp.le.s32.totalorder 2, %s13
    // Predicated region
    $region49: #{cdm_forward.1} parent=5 // pred_check
      %p625 = pneg %p624
    $region50: #{cdm_forward.1} parent=5 // pred_check_branch
      %627 = sbr.rel (%p625) target = $region52
    $region51: #{cdm_forward.1} parent=5 // pred_region
      %s628 = ssub.s32 %s13, 2
      // Predicated region
      $region53: #{cdm_forward.1} parent=51 // pred_check
        %p629 = pneg %p157
      $region54: #{cdm_forward.1} parent=51 // pred_check_branch
        %631 = sbr.rel (%p629) target = $region56
      $region55: #{cdm_forward.1} parent=51 // pred_region
        %p632 = scmp.lt.s32.totalorder %s19, 1
        %s633 = scalar_select %p632, %s19, 1
        %s634 = smul.addr %s633, 2
        %s635 = smul.addr %s634, 8
        %s636 = scalar_lea.vmem %s5, %s635
      $region56: #{cdm_forward.1} parent=51 // pred_fallthru
        _
      // Predicated region
      $region57: #{cdm_forward.1} parent=51 // pred_check
        %p637 = pneg %p183
      $region58: #{cdm_forward.1} parent=51 // pred_check_branch
        %639 = sbr.rel (%p637) target = $region60
      $region59: #{cdm_forward.1} parent=51 // pred_region
        %p640 = scmp.lt.s32.totalorder %s19, 1
        %s641 = scalar_select %p640, %s19, 1
        %s642 = smul.addr %s641, 2
        %s643 = smul.addr %s642, 8
        %s644 = scalar_lea.vmem %s6, %s643
      $region60: #{cdm_forward.1} parent=51 // pred_fallthru
        _
    $region52: #{cdm_forward.1} parent=5 // pred_fallthru
      _
  $region6: #{cdm_forward.1} parent=0 // loop_footer
    %s17 = sadd.s32 1, %s13
  $region7: #{cdm_forward.1} parent=0 // loop_footer_branch
    %12 = sbr.rel target = $region3
  $region8: #{cdm_forward.1} parent=0 // loop_exit
    _

</llo_original>
